<compile_context>
chip_gen: v6e
topology: v6e:2x2x1
jax: 0.10.0
libtpu: 0.0.40
codegen_flags: <defaults>
</compile_context>

<pallas_src>
import functools

import jax
import jax.numpy as jnp
from jax.experimental import pallas as pl
from jax.experimental.pallas import tpu as pltpu

_MAX_CHUNKS = 8  # a handful of concurrent DMA streams is enough to saturate HBM


def _slab_shape(N, F):
    """Contiguous 2D view of the N*F elements with as many rows as possible
    (more rows -> finer DMA chunking). Any factorization of T is equally
    contiguous, so this is purely a view choice."""
    T = N * F
    if T % 128 == 0 and T // 128 >= N:
        return (T // 128, 128)
    return (N, F)


def _row_chunks(rows, row_bytes, min_chunk_bytes):
    """Split `rows` into up to _MAX_CHUNKS contiguous (start, size) ranges.
    Chunk sizes/starts are multiples of 8 rows (tile-aligned); chunks are at
    least ~min_chunk_bytes unless the whole array is smaller."""
    total = rows * row_bytes
    n = max(1, min(_MAX_CHUNKS, rows // 8, total // max(1, min_chunk_bytes)))
    if n <= 1:
        return ((0, rows),)
    per = ((rows // n) // 8) * 8  # >= 8 because n <= rows // 8
    chunks = []
    start = 0
    for _ in range(n - 1):
        chunks.append((start, per))
        start += per
    chunks.append((start, rows - start))  # last chunk absorbs the remainder
    return tuple(chunks)


def _dma_copy_kernel(x_ref, o_ref, sems, *, chunks):
    # x_ref / o_ref are raw HBM refs (memory_space=pl.ANY): pure HBM -> HBM
    # DMA copy, no VMEM staging, no TensorCore load/store traffic.
    if len(chunks) == 1:
        cp = pltpu.make_async_copy(x_ref, o_ref, sems.at[0])
        cp.start()
        cp.wait()
        return
    # Start all chunk copies back-to-back (concurrent DMA streams), then wait.
    for i, (start, size) in enumerate(chunks):
        pltpu.make_async_copy(
            x_ref.at[pl.ds(start, size)],
            o_ref.at[pl.ds(start, size)],
            sems.at[i],
        ).start()
    for i, (start, size) in enumerate(chunks):
        pltpu.make_async_copy(
            x_ref.at[pl.ds(start, size)],
            o_ref.at[pl.ds(start, size)],
            sems.at[i],
        ).wait()


def flatten(x, *, min_chunk_bytes=1 << 20):
    """Pallas equivalent of torch Flatten: (N, ...) -> (N, prod(rest))."""
    N = x.shape[0]
    F = 1
    for d in x.shape[1:]:
        F *= d
    if N == 0 or F == 0:
        return jnp.reshape(x, (N, F))  # nothing to copy

    itemsize = jnp.dtype(x.dtype).itemsize
    R, C = _slab_shape(N, F)
    chunks = _row_chunks(R, C * itemsize, min_chunk_bytes)

    # Contiguous view of the input as the copy slab (wrapper-side plumbing).
    x_slab = jnp.reshape(x, (R, C))

    out_slab = pl.pallas_call(
        functools.partial(_dma_copy_kernel, chunks=chunks),
        out_shape=jax.ShapeDtypeStruct((R, C), x.dtype),
        in_specs=[pl.BlockSpec(memory_space=pl.ANY)],
        out_specs=pl.BlockSpec(memory_space=pl.ANY),
        scratch_shapes=[pltpu.SemaphoreType.DMA((len(chunks),))],
        compiler_params=pltpu.CompilerParams(has_side_effects=True),
        cost_estimate=pl.CostEstimate(
            flops=0,
            transcendentals=0,
            bytes_accessed=2 * N * F * itemsize,
        ),
    )(x_slab)

    # TODO(synk): if the caller can donate x, this op is a free metadata
    # reshape (jnp.reshape(x, (N, F))); the copy exists only because a Pallas
    # kernel is mandated.
    return jnp.reshape(out_slab, (N, F))


if __name__ == "__main__":
    key = jax.random.PRNGKey(0)
    N, C, H, W = 2, 4, 16, 16
    x = jax.random.normal(key, (N, C, H, W), dtype=jnp.float32)

    out = jax.block_until_ready(flatten(x))

    # reference: plain JAX reshape (same semantics as torch .view(N, -1))
    ref = x.reshape(N, -1)
    assert out.shape == (N, C * H * W), out.shape
    assert out.dtype == x.dtype
    assert jnp.array_equal(out, ref), "mismatch vs reference flatten"

    # Exercise the multi-chunk DMA path (force small chunks) at a small shape.
    x2 = jax.random.normal(jax.random.PRNGKey(1), (8, 4, 32, 32), jnp.float32)
    out2 = jax.block_until_ready(flatten(x2, min_chunk_bytes=8 * 1024))
    assert jnp.array_equal(out2, x2.reshape(8, -1)), "mismatch (multi-chunk)"

    # Exercise the non-multiple-of-128 slab fallback.
    x3 = jax.random.normal(jax.random.PRNGKey(2), (2, 3, 5, 7), jnp.float32)
    out3 = jax.block_until_ready(flatten(x3))
    assert jnp.array_equal(out3, x3.reshape(2, -1)), "mismatch (odd shape)"

    print("KERNEL_OK")
</pallas_src>

<mosaic_0001>
module attributes {stable_mosaic.version = 11 : i64} {
  func.func @_dma_copy_kernel(%arg0: memref<16x128xf32, #tpu.memory_space<any>>, %arg1: memref<16x128xf32, #tpu.memory_space<any>>, %arg2: memref<1x!tpu.dma_semaphore, #tpu.memory_space<semaphore_mem>>) attributes {dimension_semantics = [], scalar_prefetch = 0 : i64, scratch_operands = 1 : i64, tpu.core_type = #tpu.core_type<tc>} {
    %c0_i32 = arith.constant 0 : i32
    %0 = tpu.memref_slice %arg2[%c0_i32] : memref<1x!tpu.dma_semaphore, #tpu.memory_space<semaphore_mem>> -> memref<1x!tpu.dma_semaphore, #tpu.memory_space<semaphore_mem>>
    %1 = tpu.memref_squeeze %0 : memref<1x!tpu.dma_semaphore, #tpu.memory_space<semaphore_mem>> -> memref<!tpu.dma_semaphore, #tpu.memory_space<semaphore_mem>>
    tpu.enqueue_dma source(%arg0 : memref<16x128xf32, #tpu.memory_space<any>>) target(%arg1 : memref<16x128xf32, #tpu.memory_space<any>>) target_semaphore(%1 : memref<!tpu.dma_semaphore, #tpu.memory_space<semaphore_mem>>)
    %c0_i32_0 = arith.constant 0 : i32
    %2 = tpu.memref_slice %arg2[%c0_i32_0] : memref<1x!tpu.dma_semaphore, #tpu.memory_space<semaphore_mem>> -> memref<1x!tpu.dma_semaphore, #tpu.memory_space<semaphore_mem>>
    %3 = tpu.memref_squeeze %2 : memref<1x!tpu.dma_semaphore, #tpu.memory_space<semaphore_mem>> -> memref<!tpu.dma_semaphore, #tpu.memory_space<semaphore_mem>>
    tpu.wait_dma2 semaphore(%3 : memref<!tpu.dma_semaphore, #tpu.memory_space<semaphore_mem>>) src(%arg0 : memref<16x128xf32, #tpu.memory_space<any>>) dst(%arg1 : memref<16x128xf32, #tpu.memory_space<any>>)
    return
  }
}

</mosaic_0001>

<llo_original>
// kernel: tpu_custom_call.1
$region0: #{tpu_custom_call.1}
  #allocation0 [shape = 'u32[]', space=smem, size = 0x4, offset = 0x4, fixed_abs, tag = 'smem constant byte address 0x4 - core index']
  #allocation1 [shape = 'u32[144,128]{1,0:T(1,128)}', space=vmem, size = 0x12000, scoped, tag = 'internal scratch']
  #allocation2 [shape = 's32[1]{0}', space=sflag, size = 0x4, scoped, tag = 'scratch operand']
  #allocation3 [shape = 's32[]', space=sflag, size = 0x4, offset = 0, fixed_abs, tag = 'sflag constant byte address 0x0 - dummy sync flag']
  #allocation4 [shape = 'u32[0]{0}', space=smem, size = 0, offset = 0, fixed_abs, tag = 'smem constant byte address 0x0 - null']
  %s0 = inlined_call_operand.hbm [shape: f32[16,128], index: 0, kind: input, shape index: {}]
  %s1 = inlined_call_operand.hbm [shape: f32[16,128], index: 1, kind: output, shape index: {}]
  %s2 = sld [smem:[#allocation0]]
  $region2: #{tpu_custom_call.1} parent=0
    _
  %s4 = ssub.s32 1, %s2
  %s5 = scalar_select 0, %s4, %s2
  %s7 = sshll.u32 1, 14
  %s8 = sxor.u32 4294967295, %s7
  %12 = dma.general %s0, 256, %s1, [#allocation2], 131072, [#allocation4], 0, 0
  %s13 = smul.u32 16, 1
  %s14 = sshll.u32 %s13, 4
  %15 = dma.done [#allocation2], %s14
  %16 = vsyncmov [#allocation2]
  %s17 = vpop.sfrf %16
  %p18 = scmp.eq.s32.totalorder %s17, 0
  %p19 = pneg %p18
  %21 = shalt.err (%p19)

</llo_original>
